<compile_context>
chip_gen: v6e
topology: v6e:2x2x1
jax: 0.10.0
libtpu: 0.0.40
codegen_flags: <defaults>
</compile_context>

<pallas_src>
import math
from functools import partial

import jax
import jax.numpy as jnp
from jax.experimental import pallas as pl
from jax.experimental.pallas import tpu as pltpu

LN2PI = math.log(2.0 * math.pi)
LANES = 128  # TPU vreg lane width; all packed last dims are multiples of this.


def _round_up(x, m):
    return ((x + m - 1) // m) * m


# ---------------------------------------------------------------------------
# Parameter packing: every weight & bias goes into ONE lane-dense f32 slab of
# width F = round_up(max layer width, 128). Weight blocks are (F, F); bias
# blocks are (8, F); mu / logsig head weights and biases are fused column-wise.
# ---------------------------------------------------------------------------
def pack_actor_params(params, dim_obs, dim_action):
    hidden = params["hidden"]
    widths = [dim_obs] + [int(w.shape[1]) for (w, _) in hidden] + [2 * dim_action + 1]
    F = _round_up(max(widths), LANES)

    def pad_block(x, rows):
        x = jnp.asarray(x, jnp.float32)
        return jnp.pad(x, ((0, rows - x.shape[0]), (0, F - x.shape[1])))

    blocks = []
    row = 0

    # hidden weights, each padded to (F, F)
    w_rows = []
    for (w, _) in hidden:
        w_rows.append(row)
        blocks.append(pad_block(w, F))
        row += F

    # fused head weight [w_mu | w_logsig] padded to (F, F)
    w_head = jnp.concatenate(
        [jnp.asarray(params["w_mu"], jnp.float32),
         jnp.asarray(params["w_logsig"], jnp.float32)], axis=1)
    head_w_row = row
    blocks.append(pad_block(w_head, F))
    row += F

    # biases: one 8-row group each (row 0 of the group holds the bias)
    b_rows = []
    for (_, b) in hidden:
        b_rows.append(row)
        blocks.append(pad_block(jnp.asarray(b, jnp.float32).reshape(1, -1), 8))
        row += 8
    b_head = jnp.concatenate(
        [jnp.asarray(params["b_mu"], jnp.float32).reshape(1, -1),
         jnp.asarray(params["b_logsig"], jnp.float32).reshape(1, -1)], axis=1)
    head_b_row = row
    blocks.append(pad_block(b_head, 8))
    row += 8

    slab = jnp.concatenate(blocks, axis=0)
    layout = {
        "hidden": tuple((int(wr), int(br)) for wr, br in zip(w_rows, b_rows)),
        "head": (int(head_w_row), int(head_b_row)),
        "feat": int(F),
    }
    return slab, layout


# ---------------------------------------------------------------------------
# Kernel: one batch tile per grid step; weight slab fully resident in VMEM.
# All loads / dots are full F-lane width (8/128-aligned, no repacking).
# ---------------------------------------------------------------------------
def _actor_kernel(layout, dim_action, obs_ref, noise_ref, p_ref, out_ref):
    A = dim_action
    F = layout["feat"]

    # ---- hidden trunk: x = relu(x @ W + b), everything F lanes wide ----
    x = obs_ref[...]
    for (w_row, b_row) in layout["hidden"]:
        w = p_ref[w_row:w_row + F, :]          # (F, F), zero-padded
        b = p_ref[b_row:b_row + 1, :]          # (1, F)
        x = jnp.maximum(jnp.dot(x, w, preferred_element_type=jnp.float32) + b, 0.0)

    # ---- fused heads: [mu | logsig] in a single matmul ----
    w_row, b_row = layout["head"]
    w = p_ref[w_row:w_row + F, :]
    b = p_ref[b_row:b_row + 1, :]
    head = jnp.dot(x, w, preferred_element_type=jnp.float32) + b
    mu = head[:, :A]
    logsig = head[:, A:2 * A]

    # ---- reparameterized sample + tanh squash ----
    noise = noise_ref[:, :A]
    sig = jnp.exp(logsig)
    u = mu + sig * noise
    a = jnp.tanh(u)
    tanh_mu = jnp.tanh(mu)

    # ---- log-prob of squashed Gaussian ----
    # log(sig^2) == 2*logsig and (u - mu)^2 / sig^2 == noise^2 exactly,
    # so no exp->log round trip, no division, no underflow.
    log_sig2_sum = 2.0 * jnp.sum(logsig, axis=1, keepdims=True)
    quad_sum = jnp.sum(noise * noise, axis=1, keepdims=True)
    logp = -0.5 * (log_sig2_sum + quad_sum + A * LN2PI)
    logp = logp - jnp.sum(jnp.log(1.0 - a * a + 1e-6), axis=1, keepdims=True)

    # ---- single lane-dense (tile_b, F) output block ----
    # layout: [ a (A) | tanh(mu) (A) | logProba (1) | zero pad ]
    out_ref[...] = jnp.zeros_like(out_ref)
    out_ref[:, 0:A] = a
    out_ref[:, A:2 * A] = tanh_mu
    out_ref[:, 2 * A:2 * A + 1] = logp


# ---------------------------------------------------------------------------
# Wrapper: batch grid + BlockSpecs; outputs sliced out of the packed block.
# ---------------------------------------------------------------------------
def actor_net_forward(obs, noise, param_slab, layout, dim_action, tile_b=None):
    obs = jnp.asarray(obs, jnp.float32)
    noise = jnp.asarray(noise, jnp.float32)
    B, dim_obs = obs.shape
    A = dim_action
    F = layout["feat"]

    if tile_b is None:
        tile_b = min(512, _round_up(B, 8))
    B_pad = _round_up(B, tile_b)

    # lane-dense (F-wide) padded copies of the streaming inputs
    obs_p = jnp.zeros((B_pad, F), jnp.float32).at[:B, :dim_obs].set(obs)
    noise_p = jnp.zeros((B_pad, F), jnp.float32).at[:B, :A].set(noise)

    R = param_slab.shape[0]
    grid = (B_pad // tile_b,)

    out = pl.pallas_call(
        partial(_actor_kernel, layout, A),
        out_shape=jax.ShapeDtypeStruct((B_pad, F), jnp.float32),
        grid=grid,
        in_specs=[
            pl.BlockSpec((tile_b, F), lambda i: (i, 0)),  # obs tile
            pl.BlockSpec((tile_b, F), lambda i: (i, 0)),  # noise tile
            pl.BlockSpec((R, F), lambda i: (0, 0)),       # params resident
        ],
        out_specs=pl.BlockSpec((tile_b, F), lambda i: (i, 0)),
        compiler_params=pltpu.CompilerParams(
            dimension_semantics=("parallel",)),
    )(obs_p, noise_p, param_slab)

    a = out[:B, :A]
    tanh_mu = out[:B, A:2 * A]
    logp = out[:B, 2 * A:2 * A + 1]
    return a, logp, tanh_mu


# ---------------------------------------------------------------------------
# Init + pure-JAX reference (mirrors the PyTorch module, in f32).
# ---------------------------------------------------------------------------
def xavier_uniform(key, fan_in, fan_out, dtype=jnp.float32):
    bound = math.sqrt(6.0 / (fan_in + fan_out))
    return jax.random.uniform(key, (fan_in, fan_out), dtype=dtype,
                              minval=-bound, maxval=bound)


def init_actor_params(key, dim_obs, dim_action, dims_hidden):
    n_neurons = (dim_obs,) + tuple(dims_hidden) + (dim_action,)
    keys = jax.random.split(key, len(dims_hidden) + 2)
    hidden = []
    for i, (d_in, d_out) in enumerate(zip(n_neurons[:-2], n_neurons[1:-1])):
        w = xavier_uniform(keys[i], d_in, d_out)
        b = jnp.zeros((1, d_out), jnp.float32)
        hidden.append((w, b))
    d_last = n_neurons[-2]
    w_mu = xavier_uniform(keys[-2], d_last, dim_action)
    w_ls = xavier_uniform(keys[-1], d_last, dim_action)
    return {
        "hidden": hidden,
        "w_mu": w_mu, "b_mu": jnp.zeros((1, dim_action), jnp.float32),
        "w_logsig": w_ls, "b_logsig": jnp.zeros((1, dim_action), jnp.float32),
    }


def actor_net_reference(obs, params, noise, dim_action):
    P = jax.lax.Precision.HIGHEST
    x = obs
    for w, b in params["hidden"]:
        x = jnp.maximum(jnp.dot(x, w, precision=P) + b, 0.0)
    mu = jnp.dot(x, params["w_mu"], precision=P) + params["b_mu"]
    sig = jnp.exp(jnp.dot(x, params["w_logsig"], precision=P) + params["b_logsig"])
    u = mu + sig * noise
    a = jnp.tanh(u)
    logProbu = -0.5 * (jnp.sum(jnp.log(sig ** 2), axis=1, keepdims=True)
                       + jnp.sum((u - mu) ** 2 / sig ** 2, axis=1, keepdims=True)
                       + dim_action * LN2PI)
    logProba = logProbu - jnp.sum(jnp.log(1.0 - a ** 2 + 1e-6), axis=1, keepdims=True)
    return a, logProba, jnp.tanh(mu)


if __name__ == "__main__":
    B, dim_obs, dim_action = 8, 16, 8
    dims_hidden = (32, 32)

    key = jax.random.PRNGKey(0)
    k_param, k_obs, k_noise = jax.random.split(key, 3)

    params = init_actor_params(k_param, dim_obs, dim_action, dims_hidden)
    obs = jax.random.normal(k_obs, (B, dim_obs), jnp.float32)
    noise = jax.random.normal(k_noise, (B, dim_action), jnp.float32)

    slab, layout = pack_actor_params(params, dim_obs, dim_action)

    a, logp, tanh_mu = actor_net_forward(obs, noise, slab, layout, dim_action)
    jax.block_until_ready((a, logp, tanh_mu))

    assert a.shape == (B, dim_action)
    assert logp.shape == (B, 1)
    assert tanh_mu.shape == (B, dim_action)

    # correctness check against a pure-JAX reference of the PyTorch math
    a_r, logp_r, tanhmu_r = actor_net_reference(obs, params, noise, dim_action)
    assert jnp.allclose(a, a_r, atol=1e-2, rtol=1e-2)
    assert jnp.allclose(tanh_mu, tanhmu_r, atol=1e-2, rtol=1e-2)
    assert jnp.allclose(logp, logp_r, atol=1e-2, rtol=1e-2)

    print("KERNEL_OK")
</pallas_src>

<mosaic_0001>
module attributes {stable_mosaic.version = 11 : i64} {
  func.func @_actor_kernel(%arg0: i32, %arg1: memref<8x128xf32, #tpu.memory_space<vmem>>, %arg2: memref<8x128xf32, #tpu.memory_space<vmem>>, %arg3: memref<408x128xf32, #tpu.memory_space<vmem>>, %arg4: memref<8x128xf32, #tpu.memory_space<vmem>>) attributes {dimension_semantics = [#tpu.dimension_semantics<parallel>], iteration_bounds = array<i64: 1>, scalar_prefetch = 0 : i64, scratch_operands = 0 : i64, tpu.core_type = #tpu.core_type<tc>, window_params = [{transform_indices = @transform_0, window_bounds = array<i64: 8, 128>}, {transform_indices = @transform_1, window_bounds = array<i64: 8, 128>}, {pipeline_mode = #tpu.pipeline_mode<synchronous>, transform_indices = @transform_2, window_bounds = array<i64: 408, 128>}, {transform_indices = @transform_3, window_bounds = array<i64: 8, 128>}]} {
    %c0 = arith.constant 0 : index
    %c0_0 = arith.constant 0 : index
    %0 = vector.load %arg1[%c0, %c0_0] : memref<8x128xf32, #tpu.memory_space<vmem>>, vector<8x128xf32>
    %c0_1 = arith.constant 0 : index
    %c0_2 = arith.constant 0 : index
    %1 = vector.load %arg3[%c0_1, %c0_2] : memref<408x128xf32, #tpu.memory_space<vmem>>, vector<128x128xf32>
    %c384 = arith.constant 384 : index
    %c0_3 = arith.constant 0 : index
    %2 = vector.load %arg3[%c384, %c0_3] : memref<408x128xf32, #tpu.memory_space<vmem>>, vector<1x128xf32>
    %cst = arith.constant dense<0.000000e+00> : vector<8x128xf32>
    %3 = tpu.matmul %0, %1, %cst {dimension_numbers = #tpu.dot_dimension_numbers<[1], [0], [0], [1], [0, 0, 1, 1], [], []>} : vector<8x128xf32>, vector<128x128xf32>, vector<8x128xf32> -> vector<8x128xf32>
    %4 = vector.broadcast %2 : vector<1x128xf32> to vector<8x128xf32>
    %5 = arith.addf %3, %4 : vector<8x128xf32>
    %cst_4 = arith.constant 0.000000e+00 : f32
    %6 = vector.broadcast %cst_4 : f32 to vector<8x128xf32>
    %7 = arith.maximumf %5, %6 : vector<8x128xf32>
    %c128 = arith.constant 128 : index
    %c0_5 = arith.constant 0 : index
    %8 = vector.load %arg3[%c128, %c0_5] : memref<408x128xf32, #tpu.memory_space<vmem>>, vector<128x128xf32>
    %c392 = arith.constant 392 : index
    %c0_6 = arith.constant 0 : index
    %9 = vector.load %arg3[%c392, %c0_6] : memref<408x128xf32, #tpu.memory_space<vmem>>, vector<1x128xf32>
    %cst_7 = arith.constant dense<0.000000e+00> : vector<8x128xf32>
    %10 = tpu.matmul %7, %8, %cst_7 {dimension_numbers = #tpu.dot_dimension_numbers<[1], [0], [0], [1], [0, 0, 1, 1], [], []>} : vector<8x128xf32>, vector<128x128xf32>, vector<8x128xf32> -> vector<8x128xf32>
    %11 = vector.broadcast %9 : vector<1x128xf32> to vector<8x128xf32>
    %12 = arith.addf %10, %11 : vector<8x128xf32>
    %cst_8 = arith.constant 0.000000e+00 : f32
    %13 = vector.broadcast %cst_8 : f32 to vector<8x128xf32>
    %14 = arith.maximumf %12, %13 : vector<8x128xf32>
    %c256 = arith.constant 256 : index
    %c0_9 = arith.constant 0 : index
    %15 = vector.load %arg3[%c256, %c0_9] : memref<408x128xf32, #tpu.memory_space<vmem>>, vector<128x128xf32>
    %c400 = arith.constant 400 : index
    %c0_10 = arith.constant 0 : index
    %16 = vector.load %arg3[%c400, %c0_10] : memref<408x128xf32, #tpu.memory_space<vmem>>, vector<1x128xf32>
    %cst_11 = arith.constant dense<0.000000e+00> : vector<8x128xf32>
    %17 = tpu.matmul %14, %15, %cst_11 {dimension_numbers = #tpu.dot_dimension_numbers<[1], [0], [0], [1], [0, 0, 1, 1], [], []>} : vector<8x128xf32>, vector<128x128xf32>, vector<8x128xf32> -> vector<8x128xf32>
    %18 = vector.broadcast %16 : vector<1x128xf32> to vector<8x128xf32>
    %19 = arith.addf %17, %18 : vector<8x128xf32>
    %20 = vector.extract_strided_slice %19 {offsets = [0, 0], sizes = [8, 8], strides = [1, 1]} : vector<8x128xf32> to vector<8x8xf32>
    %21 = vector.extract_strided_slice %19 {offsets = [0, 8], sizes = [8, 8], strides = [1, 1]} : vector<8x128xf32> to vector<8x8xf32>
    %c0_12 = arith.constant 0 : index
    %c0_13 = arith.constant 0 : index
    %22 = vector.load %arg2[%c0_12, %c0_13] : memref<8x128xf32, #tpu.memory_space<vmem>>, vector<8x8xf32>
    %23 = math.exp %21 : vector<8x8xf32>
    %24 = arith.mulf %23, %22 : vector<8x8xf32>
    %25 = arith.addf %20, %24 : vector<8x8xf32>
    %26 = math.tanh %25 : vector<8x8xf32>
    %27 = math.tanh %20 : vector<8x8xf32>
    %cst_14 = arith.constant dense<0.000000e+00> : vector<8xf32>
    %28 = vector.multi_reduction <add>, %21, %cst_14 [1] : vector<8x8xf32> to vector<8xf32>
    %29 = vector.shape_cast %28 : vector<8xf32> to vector<8x1xf32>
    %cst_15 = arith.constant 2.000000e+00 : f32
    %30 = vector.broadcast %cst_15 : f32 to vector<8x1xf32>
    %31 = arith.mulf %30, %29 : vector<8x1xf32>
    %32 = arith.mulf %22, %22 : vector<8x8xf32>
    %cst_16 = arith.constant dense<0.000000e+00> : vector<8xf32>
    %33 = vector.multi_reduction <add>, %32, %cst_16 [1] : vector<8x8xf32> to vector<8xf32>
    %34 = vector.shape_cast %33 : vector<8xf32> to vector<8x1xf32>
    %35 = arith.addf %31, %34 : vector<8x1xf32>
    %cst_17 = arith.constant 14.7030163 : f32
    %36 = vector.broadcast %cst_17 : f32 to vector<8x1xf32>
    %37 = arith.addf %35, %36 : vector<8x1xf32>
    %cst_18 = arith.constant -5.000000e-01 : f32
    %38 = vector.broadcast %cst_18 : f32 to vector<8x1xf32>
    %39 = arith.mulf %38, %37 : vector<8x1xf32>
    %40 = arith.mulf %26, %26 : vector<8x8xf32>
    %cst_19 = arith.constant 1.000000e+00 : f32
    %41 = vector.broadcast %cst_19 : f32 to vector<8x8xf32>
    %42 = arith.subf %41, %40 : vector<8x8xf32>
    %cst_20 = arith.constant 9.99999997E-7 : f32
    %43 = vector.broadcast %cst_20 : f32 to vector<8x8xf32>
    %44 = arith.addf %42, %43 : vector<8x8xf32>
    %45 = math.log %44 : vector<8x8xf32>
    %cst_21 = arith.constant dense<0.000000e+00> : vector<8xf32>
    %46 = vector.multi_reduction <add>, %45, %cst_21 [1] : vector<8x8xf32> to vector<8xf32>
    %47 = vector.shape_cast %46 : vector<8xf32> to vector<8x1xf32>
    %48 = arith.subf %39, %47 : vector<8x1xf32>
    %cst_22 = arith.constant 0.000000e+00 : f32
    %49 = vector.broadcast %cst_22 : f32 to vector<8x128xf32>
    %c0_23 = arith.constant 0 : index
    %c0_24 = arith.constant 0 : index
    %50 = vector.load %arg4[%c0_23, %c0_24] : memref<8x128xf32, #tpu.memory_space<vmem>>, vector<8x128xf32>
    tpu.vector_store %arg4[%c0_23, %c0_24], %49 {strides = array<i32>} : memref<8x128xf32, #tpu.memory_space<vmem>>, vector<8x128xf32>,
    %c0_25 = arith.constant 0 : index
    %c0_26 = arith.constant 0 : index
    %51 = vector.load %arg4[%c0_25, %c0_26] : memref<8x128xf32, #tpu.memory_space<vmem>>, vector<8x8xf32>
    tpu.vector_store %arg4[%c0_25, %c0_26], %26 {strides = array<i32>} : memref<8x128xf32, #tpu.memory_space<vmem>>, vector<8x8xf32>,
    %c0_27 = arith.constant 0 : index
    %c8 = arith.constant 8 : index
    %52 = vector.load %arg4[%c0_27, %c8] : memref<8x128xf32, #tpu.memory_space<vmem>>, vector<8x8xf32>
    tpu.vector_store %arg4[%c0_27, %c8], %27 {strides = array<i32>} : memref<8x128xf32, #tpu.memory_space<vmem>>, vector<8x8xf32>,
    %c0_28 = arith.constant 0 : index
    %c16 = arith.constant 16 : index
    %53 = vector.load %arg4[%c0_28, %c16] : memref<8x128xf32, #tpu.memory_space<vmem>>, vector<8x1xf32>
    tpu.vector_store %arg4[%c0_28, %c16], %48 {strides = array<i32>} : memref<8x128xf32, #tpu.memory_space<vmem>>, vector<8x1xf32>,
    return
  }
  func.func @transform_0(%arg0: i32) -> (i32, i32) {
    %c0_i32 = arith.constant 0 : i32
    %c0_i32_0 = arith.constant 0 : i32
    return %arg0, %c0_i32 : i32, i32
  }
  func.func @transform_1(%arg0: i32) -> (i32, i32) {
    %c0_i32 = arith.constant 0 : i32
    %c0_i32_0 = arith.constant 0 : i32
    return %arg0, %c0_i32 : i32, i32
  }
  func.func @transform_2(%arg0: i32) -> (i32, i32) {
    %c0_i32 = arith.constant 0 : i32
    %c0_i32_0 = arith.constant 0 : i32
    %c0_i32_1 = arith.constant 0 : i32
    return %c0_i32, %c0_i32_0 : i32, i32
  }
  func.func @transform_3(%arg0: i32) -> (i32, i32) {
    %c0_i32 = arith.constant 0 : i32
    %c0_i32_0 = arith.constant 0 : i32
    return %arg0, %c0_i32 : i32, i32
  }
}

</mosaic_0001>

<llo_original>
// kernel: tpu_custom_call.1
$region0: #{tpu_custom_call.1}
  #allocation0 [shape = 'u32[]', space=smem, size = 0x4, offset = 0x4, fixed_abs, tag = 'smem constant byte address 0x4 - core index']
  #allocation1 [shape = 'u32[144,128]{1,0:T(1,128)}', space=vmem, size = 0x12000, scoped, tag = 'internal scratch']
  %s0 = inlined_call_operand.hbm [shape: f32[8,128], index: 0, kind: input, shape index: {}]
  %s1 = inlined_call_operand.hbm [shape: f32[8,128], index: 1, kind: input, shape index: {}]
  %s2 = inlined_call_operand.hbm [shape: f32[408,128], index: 2, kind: input, shape index: {}]
  %s3 = inlined_call_operand.hbm [shape: f32[8,128], index: 3, kind: output, shape index: {}]
  %s4 = sld [smem:[#allocation0]]
  $region34: #{tpu_custom_call.1} parent=0
    _
  %s6 = ssub.s32 1, %s4
  %s7 = scalar_select 0, %s6, %s4
  $region1: #{tpu_custom_call.1} parent=0
    #allocation2 [shape = 'u8[4096]{0}', space=vmem, size = 0x1000, scoped, tag = 'input window, operand 0, single buffered']
    #allocation3 [shape = 's32[1]{0}', space=sflag, size = 0x4, scoped, tag = 'scoped memory for tpu_custom_call.1']
    #allocation4 [shape = 's32[1]{0}', space=sflag, size = 0x4, scoped, tag = 'scoped memory for tpu_custom_call.1']
    #allocation5 [shape = 'u8[4096]{0}', space=vmem, size = 0x1000, scoped, tag = 'input window, operand 1, single buffered']
    #allocation6 [shape = 's32[1]{0}', space=sflag, size = 0x4, scoped, tag = 'scoped memory for tpu_custom_call.1']
    #allocation7 [shape = 'u8[208896]{0}', space=vmem, size = 0x33000, scoped, tag = 'input window, operand 2, single buffered']
    #allocation8 [shape = 'u8[4096]{0}', space=vmem, size = 0x1000, scoped, tag = 'output window, operand 0, single buffered']
    %8 = vsyncpa [#allocation3], 0
    %9 = vsyncpa [#allocation6], 0
    %10 = vsyncpa [#allocation4], 0
    // Predicated region
    $region2: #{tpu_custom_call.1} parent=1 // pred_check
      _
    $region3: #{tpu_custom_call.1} parent=1 // pred_check_branch
      %12 = sbr.rel (0) target = $region5
    $region4: #{tpu_custom_call.1} parent=1 // pred_region
      %s14 = ssub.s32 128, 128
      %15 = vsyncadd [#allocation3], %s14
      %s17 = sshll.u32 [#allocation2], 4
      %s18 = int_to_ptr.vmem [resolvable:$true] %s17
      %20 = dma.hbm_to_vmem [thread:$0]  %s0, 128, %s18, [#allocation3]
    $region5: #{tpu_custom_call.1} parent=1 // pred_fallthru
      _
    // Predicated region
    $region6: #{tpu_custom_call.1} parent=1 // pred_check
      _
    $region7: #{tpu_custom_call.1} parent=1 // pred_check_branch
      %22 = sbr.rel (0) target = $region9
    $region8: #{tpu_custom_call.1} parent=1 // pred_region
      %s24 = ssub.s32 128, 128
      %25 = vsyncadd [#allocation6], %s24
      %s27 = sshll.u32 [#allocation5], 4
      %s28 = int_to_ptr.vmem [resolvable:$true] %s27
      %30 = dma.hbm_to_vmem [thread:$0]  %s1, 128, %s28, [#allocation6]
    $region9: #{tpu_custom_call.1} parent=1 // pred_fallthru
      _
    // Predicated region
    $region10: #{tpu_custom_call.1} parent=1 // pred_check
      _
    $region11: #{tpu_custom_call.1} parent=1 // pred_check_branch
      %32 = sbr.rel (0) target = $region13
    $region12: #{tpu_custom_call.1} parent=1 // pred_region
      %s34 = ssub.s32 6528, 6528
      %35 = vsyncadd [#allocation6], %s34
      %s36 = sshll.u32 [#allocation7], 4
      %s37 = int_to_ptr.vmem [resolvable:$true] %s36
      %42 = dma.hbm_to_vmem [thread:$0]  %s2, 6528, %s37, [#allocation6], 128, 128, 8
    $region13: #{tpu_custom_call.1} parent=1 // pred_fallthru
      _
    // Predicated region
    $region14: #{tpu_custom_call.1} parent=1 // pred_check
      _
    $region15: #{tpu_custom_call.1} parent=1 // pred_check_branch
      %44 = sbr.rel (0) target = $region17
    $region16: #{tpu_custom_call.1} parent=1 // pred_region
      %45 = dma.done [#allocation3], 128
    $region17: #{tpu_custom_call.1} parent=1 // pred_fallthru
      _
    // Predicated region
    $region18: #{tpu_custom_call.1} parent=1 // pred_check
      _
    $region19: #{tpu_custom_call.1} parent=1 // pred_check_branch
      %47 = sbr.rel (0) target = $region21
    $region20: #{tpu_custom_call.1} parent=1 // pred_region
      %48 = dma.done [#allocation6], 128
    $region21: #{tpu_custom_call.1} parent=1 // pred_fallthru
      _
    // Predicated region
    $region22: #{tpu_custom_call.1} parent=1 // pred_check
      _
    $region23: #{tpu_custom_call.1} parent=1 // pred_check_branch
      %50 = sbr.rel (0) target = $region25
    $region24: #{tpu_custom_call.1} parent=1 // pred_region
      %51 = dma.done [#allocation6], 6528
    $region25: #{tpu_custom_call.1} parent=1 // pred_fallthru
      _
    %v52 = vld [vmem:[#allocation2] sm:$0xff]
    %v53 = vld [vmem:[#allocation7] sm:$0xff]
    %v54 = vld [vmem:[#allocation7 + $0x8] sm:$0xff]
    %v55 = vld [vmem:[#allocation7 + $0x10] sm:$0xff]
    %v56 = vld [vmem:[#allocation7 + $0x18] sm:$0xff]
    %v57 = vld [vmem:[#allocation7 + $0x20] sm:$0xff]
    %v58 = vld [vmem:[#allocation7 + $0x28] sm:$0xff]
    %v59 = vld [vmem:[#allocation7 + $0x30] sm:$0xff]
    %v60 = vld [vmem:[#allocation7 + $0x38] sm:$0xff]
    %v61 = vld [vmem:[#allocation7 + $0x40] sm:$0xff]
    %v62 = vld [vmem:[#allocation7 + $0x48] sm:$0xff]
    %v63 = vld [vmem:[#allocation7 + $0x50] sm:$0xff]
    %v64 = vld [vmem:[#allocation7 + $0x58] sm:$0xff]
    %v65 = vld [vmem:[#allocation7 + $0x60] sm:$0xff]
    %v66 = vld [vmem:[#allocation7 + $0x68] sm:$0xff]
    %v67 = vld [vmem:[#allocation7 + $0x70] sm:$0xff]
    %v68 = vld [vmem:[#allocation7 + $0x78] sm:$0xff]
    %v69 = vld [vmem:[#allocation7 + $0x180] sm:$0x1]
    %v70 = vlaneseq
    %v71 = vshrl.u32 %v70, 7
    %v72 = vsub.s32 0, %v71
    %v73 = vrot.slane %v69, %v72
    %74 = vmatprep.subr.mxu0 0.0
    %75 = vmatpush1.msra.mxu0 %v68
    %76 = vmatprep.subr.mxu0 0.0
    %77 = vmatpush1.msra.mxu0 %v67
    %78 = vmatprep.subr.mxu0 0.0
    %79 = vmatpush1.msra.mxu0 %v66
    %80 = vmatprep.subr.mxu0 0.0
    %81 = vmatpush1.msra.mxu0 %v65
    %82 = vmatprep.subr.mxu0 0.0
    %83 = vmatpush1.msra.mxu0 %v64
    %84 = vmatprep.subr.mxu0 0.0
    %85 = vmatpush1.msra.mxu0 %v63
    %86 = vmatprep.subr.mxu0 0.0
    %87 = vmatpush1.msra.mxu0 %v62
    %88 = vmatprep.subr.mxu0 0.0
    %89 = vmatpush1.msra.mxu0 %v61
    %90 = vmatprep.subr.mxu0 0.0
    %91 = vmatpush1.msra.mxu0 %v60
    %92 = vmatprep.subr.mxu0 0.0
    %93 = vmatpush1.msra.mxu0 %v59
    %94 = vmatprep.subr.mxu0 0.0
    %95 = vmatpush1.msra.mxu0 %v58
    %96 = vmatprep.subr.mxu0 0.0
    %97 = vmatpush1.msra.mxu0 %v57
    %98 = vmatprep.subr.mxu0 0.0
    %99 = vmatpush1.msra.mxu0 %v56
    %100 = vmatprep.subr.mxu0 0.0
    %101 = vmatpush1.msra.mxu0 %v55
    %102 = vmatprep.subr.mxu0 0.0
    %103 = vmatpush1.msra.mxu0 %v54
    %104 = vmatprep.subr.mxu0 0.0
    %105 = vmatpush1.msra.mxu0 %v53
    %106 = vmatprep.subr.mxu0 0.0
    %107 = vmatpush2.msra.mxu0 0.0
    %108 = vmatprep.subr.mxu0 0.0
    %109 = vmatpush2.msra.mxu0 0.0
    %110 = vmatprep.subr.mxu0 0.0
    %111 = vmatpush2.msra.mxu0 0.0
    %112 = vmatprep.subr.mxu0 0.0
    %113 = vmatpush2.msra.mxu0 0.0
    %114 = vmatprep.subr.mxu0 0.0
    %115 = vmatpush2.msra.mxu0 0.0
    %116 = vmatprep.subr.mxu0 0.0
    %117 = vmatpush2.msra.mxu0 0.0
    %118 = vmatprep.subr.mxu0 0.0
    %119 = vmatpush2.msra.mxu0 0.0
    %120 = vmatprep.subr.mxu0 0.0
    %121 = vmatpush2.msra.mxu0 0.0
    %122 = vmatprep.subr.mxu0 0.0
    %123 = vmatpush2.msra.mxu0 0.0
    %124 = vmatprep.subr.mxu0 0.0
    %125 = vmatpush2.msra.mxu0 0.0
    %126 = vmatprep.subr.mxu0 0.0
    %127 = vmatpush2.msra.mxu0 0.0
    %128 = vmatprep.subr.mxu0 0.0
    %129 = vmatpush2.msra.mxu0 0.0
    %130 = vmatprep.subr.mxu0 0.0
    %131 = vmatpush2.msra.mxu0 0.0
    %132 = vmatprep.subr.mxu0 0.0
    %133 = vmatpush2.msra.mxu0 0.0
    %134 = vmatprep.subr.mxu0 0.0
    %135 = vmatpush2.msra.mxu0 0.0
    %136 = vmatprep.subr.mxu0 0.0
    %137 = vmatpush2.msra.mxu0 0.0
    %138 = vmatprep.mubr.f32.mxu0 0.0
    %139 = vmatmul.mubr.f32.gmra.mxu0 %v52
    %v140 = vpop.f32.mrf.mxu0
    %v141 = vadd.f32 %v73, %v140
    %v142 = vpop.f32.mrf.mxu0
    %143 = vdwg.mxu0
    %v144 = vmax.f32 %v141, 0.0
    %v145 = vld [vmem:[#allocation7 + $0x80] sm:$0xff]
    %v146 = vld [vmem:[#allocation7 + $0x88] sm:$0xff]
    %v147 = vld [vmem:[#allocation7 + $0x90] sm:$0xff]
    %v148 = vld [vmem:[#allocation7 + $0x98] sm:$0xff]
    %v149 = vld [vmem:[#allocation7 + $0xa0] sm:$0xff]
    %v150 = vld [vmem:[#allocation7 + $0xa8] sm:$0xff]
    %v151 = vld [vmem:[#allocation7 + $0xb0] sm:$0xff]
    %v152 = vld [vmem:[#allocation7 + $0xb8] sm:$0xff]
    %v153 = vld [vmem:[#allocation7 + $0xc0] sm:$0xff]
    %v154 = vld [vmem:[#allocation7 + $0xc8] sm:$0xff]
    %v155 = vld [vmem:[#allocation7 + $0xd0] sm:$0xff]
    %v156 = vld [vmem:[#allocation7 + $0xd8] sm:$0xff]
    %v157 = vld [vmem:[#allocation7 + $0xe0] sm:$0xff]
    %v158 = vld [vmem:[#allocation7 + $0xe8] sm:$0xff]
    %v159 = vld [vmem:[#allocation7 + $0xf0] sm:$0xff]
    %v160 = vld [vmem:[#allocation7 + $0xf8] sm:$0xff]
    %v161 = vld [vmem:[#allocation7 + $0x188] sm:$0x1]
    %v162 = vlaneseq
    %v163 = vshrl.u32 %v162, 7
    %v164 = vsub.s32 0, %v163
    %v165 = vrot.slane %v161, %v164
    %166 = vmatprep.subr.mxu0 0.0
    %167 = vmatpush1.msra.mxu0 %v160
    %168 = vmatprep.subr.mxu0 0.0
    %169 = vmatpush1.msra.mxu0 %v159
    %170 = vmatprep.subr.mxu0 0.0
    %171 = vmatpush1.msra.mxu0 %v158
    %172 = vmatprep.subr.mxu0 0.0
    %173 = vmatpush1.msra.mxu0 %v157
    %174 = vmatprep.subr.mxu0 0.0
    %175 = vmatpush1.msra.mxu0 %v156
    %176 = vmatprep.subr.mxu0 0.0
    %177 = vmatpush1.msra.mxu0 %v155
    %178 = vmatprep.subr.mxu0 0.0
    %179 = vmatpush1.msra.mxu0 %v154
    %180 = vmatprep.subr.mxu0 0.0
    %181 = vmatpush1.msra.mxu0 %v153
    %182 = vmatprep.subr.mxu0 0.0
    %183 = vmatpush1.msra.mxu0 %v152
    %184 = vmatprep.subr.mxu0 0.0
    %185 = vmatpush1.msra.mxu0 %v151
    %186 = vmatprep.subr.mxu0 0.0
    %187 = vmatpush1.msra.mxu0 %v150
    %188 = vmatprep.subr.mxu0 0.0
    %189 = vmatpush1.msra.mxu0 %v149
    %190 = vmatprep.subr.mxu0 0.0
    %191 = vmatpush1.msra.mxu0 %v148
    %192 = vmatprep.subr.mxu0 0.0
    %193 = vmatpush1.msra.mxu0 %v147
    %194 = vmatprep.subr.mxu0 0.0
    %195 = vmatpush1.msra.mxu0 %v146
    %196 = vmatprep.subr.mxu0 0.0
    %197 = vmatpush1.msra.mxu0 %v145
    %198 = vmatprep.subr.mxu0 0.0
    %199 = vmatpush2.msra.mxu0 0.0
    %200 = vmatprep.subr.mxu0 0.0
    %201 = vmatpush2.msra.mxu0 0.0
    %202 = vmatprep.subr.mxu0 0.0
    %203 = vmatpush2.msra.mxu0 0.0
    %204 = vmatprep.subr.mxu0 0.0
    %205 = vmatpush2.msra.mxu0 0.0
    %206 = vmatprep.subr.mxu0 0.0
    %207 = vmatpush2.msra.mxu0 0.0
    %208 = vmatprep.subr.mxu0 0.0
    %209 = vmatpush2.msra.mxu0 0.0
    %210 = vmatprep.subr.mxu0 0.0
    %211 = vmatpush2.msra.mxu0 0.0
    %212 = vmatprep.subr.mxu0 0.0
    %213 = vmatpush2.msra.mxu0 0.0
    %214 = vmatprep.subr.mxu0 0.0
    %215 = vmatpush2.msra.mxu0 0.0
    %216 = vmatprep.subr.mxu0 0.0
    %217 = vmatpush2.msra.mxu0 0.0
    %218 = vmatprep.subr.mxu0 0.0
    %219 = vmatpush2.msra.mxu0 0.0
    %220 = vmatprep.subr.mxu0 0.0
    %221 = vmatpush2.msra.mxu0 0.0
    %222 = vmatprep.subr.mxu0 0.0
    %223 = vmatpush2.msra.mxu0 0.0
    %224 = vmatprep.subr.mxu0 0.0
    %225 = vmatpush2.msra.mxu0 0.0
    %226 = vmatprep.subr.mxu0 0.0
    %227 = vmatpush2.msra.mxu0 0.0
    %228 = vmatprep.subr.mxu0 0.0
    %229 = vmatpush2.msra.mxu0 0.0
    %230 = vmatprep.mubr.f32.mxu0 0.0
    %231 = vmatmul.mubr.f32.gmra.mxu0 %v144
    %v232 = vpop.f32.mrf.mxu0
    %v233 = vadd.f32 %v165, %v232
    %v234 = vpop.f32.mrf.mxu0
    %235 = vdwg.mxu0
    %v236 = vmax.f32 %v233, 0.0
    %v237 = vld [vmem:[#allocation7 + $0x100] sm:$0xff]
    %v238 = vld [vmem:[#allocation7 + $0x108] sm:$0xff]
    %v239 = vld [vmem:[#allocation7 + $0x110] sm:$0xff]
    %v240 = vld [vmem:[#allocation7 + $0x118] sm:$0xff]
    %v241 = vld [vmem:[#allocation7 + $0x120] sm:$0xff]
    %v242 = vld [vmem:[#allocation7 + $0x128] sm:$0xff]
    %v243 = vld [vmem:[#allocation7 + $0x130] sm:$0xff]
    %v244 = vld [vmem:[#allocation7 + $0x138] sm:$0xff]
    %v245 = vld [vmem:[#allocation7 + $0x140] sm:$0xff]
    %v246 = vld [vmem:[#allocation7 + $0x148] sm:$0xff]
    %v247 = vld [vmem:[#allocation7 + $0x150] sm:$0xff]
    %v248 = vld [vmem:[#allocation7 + $0x158] sm:$0xff]
    %v249 = vld [vmem:[#allocation7 + $0x160] sm:$0xff]
    %v250 = vld [vmem:[#allocation7 + $0x168] sm:$0xff]
    %v251 = vld [vmem:[#allocation7 + $0x170] sm:$0xff]
    %v252 = vld [vmem:[#allocation7 + $0x178] sm:$0xff]
    %v253 = vld [vmem:[#allocation7 + $0x190] sm:$0x1]
    %v254 = vlaneseq
    %v255 = vshrl.u32 %v254, 7
    %v256 = vsub.s32 0, %v255
    %v257 = vrot.slane %v253, %v256
    %258 = vmatprep.subr.mxu0 0.0
    %259 = vmatpush1.msra.mxu0 %v252
    %260 = vmatprep.subr.mxu0 0.0
    %261 = vmatpush1.msra.mxu0 %v251
    %262 = vmatprep.subr.mxu0 0.0
    %263 = vmatpush1.msra.mxu0 %v250
    %264 = vmatprep.subr.mxu0 0.0
    %265 = vmatpush1.msra.mxu0 %v249
    %266 = vmatprep.subr.mxu0 0.0
    %267 = vmatpush1.msra.mxu0 %v248
    %268 = vmatprep.subr.mxu0 0.0
    %269 = vmatpush1.msra.mxu0 %v247
    %270 = vmatprep.subr.mxu0 0.0
    %271 = vmatpush1.msra.mxu0 %v246
    %272 = vmatprep.subr.mxu0 0.0
    %273 = vmatpush1.msra.mxu0 %v245
    %274 = vmatprep.subr.mxu0 0.0
    %275 = vmatpush1.msra.mxu0 %v244
    %276 = vmatprep.subr.mxu0 0.0
    %277 = vmatpush1.msra.mxu0 %v243
    %278 = vmatprep.subr.mxu0 0.0
    %279 = vmatpush1.msra.mxu0 %v242
    %280 = vmatprep.subr.mxu0 0.0
    %281 = vmatpush1.msra.mxu0 %v241
    %282 = vmatprep.subr.mxu0 0.0
    %283 = vmatpush1.msra.mxu0 %v240
    %284 = vmatprep.subr.mxu0 0.0
    %285 = vmatpush1.msra.mxu0 %v239
    %286 = vmatprep.subr.mxu0 0.0
    %287 = vmatpush1.msra.mxu0 %v238
    %288 = vmatprep.subr.mxu0 0.0
    %289 = vmatpush1.msra.mxu0 %v237
    %290 = vmatprep.subr.mxu0 0.0
    %291 = vmatpush2.msra.mxu0 0.0
    %292 = vmatprep.subr.mxu0 0.0
    %293 = vmatpush2.msra.mxu0 0.0
    %294 = vmatprep.subr.mxu0 0.0
    %295 = vmatpush2.msra.mxu0 0.0
    %296 = vmatprep.subr.mxu0 0.0
    %297 = vmatpush2.msra.mxu0 0.0
    %298 = vmatprep.subr.mxu0 0.0
    %299 = vmatpush2.msra.mxu0 0.0
    %300 = vmatprep.subr.mxu0 0.0
    %301 = vmatpush2.msra.mxu0 0.0
    %302 = vmatprep.subr.mxu0 0.0
    %303 = vmatpush2.msra.mxu0 0.0
    %304 = vmatprep.subr.mxu0 0.0
    %305 = vmatpush2.msra.mxu0 0.0
    %306 = vmatprep.subr.mxu0 0.0
    %307 = vmatpush2.msra.mxu0 0.0
    %308 = vmatprep.subr.mxu0 0.0
    %309 = vmatpush2.msra.mxu0 0.0
    %310 = vmatprep.subr.mxu0 0.0
    %311 = vmatpush2.msra.mxu0 0.0
    %312 = vmatprep.subr.mxu0 0.0
    %313 = vmatpush2.msra.mxu0 0.0
    %314 = vmatprep.subr.mxu0 0.0
    %315 = vmatpush2.msra.mxu0 0.0
    %316 = vmatprep.subr.mxu0 0.0
    %317 = vmatpush2.msra.mxu0 0.0
    %318 = vmatprep.subr.mxu0 0.0
    %319 = vmatpush2.msra.mxu0 0.0
    %320 = vmatprep.subr.mxu0 0.0
    %321 = vmatpush2.msra.mxu0 0.0
    %322 = vmatprep.mubr.f32.mxu0 0.0
    %323 = vmatmul.mubr.f32.gmra.mxu0 %v236
    %v324 = vpop.f32.mrf.mxu0
    %v325 = vadd.f32 %v257, %v324
    %v326 = vpop.f32.mrf.mxu0
    %327 = vdwg.mxu0
    %v328 = vld [vmem:[#allocation5] sm:$0xff]
    %v329 = vmul.f32 %v325, 1.442695
    %v330 = vpow.pop %v329
    %332 = vrot.lane.b32.xlu0 %v328, 8
    %v333 = vpop.permute.xlu0 %332
    %v335 = vmul.f32 %v330, %v333
    %337 = vrot.lane.b32.xlu0 %v335, 120
    %v338 = vpop.permute.xlu0 %337
    %v340 = vadd.f32 %v325, %v338
    %v341 = vtanh.pop %v340
    %v342 = vtanh.pop %v325
    %344 = vrot.lane.b32.xlu0 %v325, 120
    %v345 = vpop.permute.xlu0 %344
    %vm347 = vcmask 64512
    %v348 = vsel %vm347, %v345, 0.0
    %349 = vadd.xlane.f32.xlu0 %v348
    %v350 = vpop.xlane.xlu0 %349
    %v351 = vmul.f32 %v350, 2.0
    %v352 = vmul.f32 %v328, %v328
    %v353 = vsel %vm347, %v352, 0.0
    %354 = vadd.xlane.f32.xlu0 %v353
    %v355 = vpop.xlane.xlu0 %354
    %v356 = vadd.f32 %v351, %v355
    %v357 = vadd.f32 %v356, 14.703016
    %v358 = vmul.f32 %v357, -0.5
    %v359 = vmul.f32 %v341, %v341
    %v360 = vsub.f32 1.0, %v359
    %v361 = vadd.f32 %v360, 1e-06
    %v362 = vlog2.pop %v361
    %v363 = vmul.f32 %v362, 0.6931472
    %v364 = vsel %vm347, %v363, 0.0
    %365 = vadd.xlane.f32.xlu0 %v364
    %v366 = vpop.xlane.xlu0 %365
    %v367 = vsub.f32 %v358, %v366
    %368 = vst [vmem:[#allocation8] sm:$0xff] 0.0
    %369 = vst.msk [vmem:[#allocation8] sm:$0xff] %vm347, %v341
    %371 = vrot.lane.b32.xlu0 %v342, 8
    %v372 = vpop.permute.xlu0 %371
    %vm374 = vcmask 130112
    %375 = vst.msk [vmem:[#allocation8] sm:$0xff] %vm374, %v372
    %vm376 = vcmask 138368
    %377 = vst.msk [vmem:[#allocation8] sm:$0xff] %vm376, %v367
    // Predicated region
    $region26: #{tpu_custom_call.1} parent=1 // pred_check
      _
    $region27: #{tpu_custom_call.1} parent=1 // pred_check_branch
      %379 = sbr.rel (0) target = $region29
    $region28: #{tpu_custom_call.1} parent=1 // pred_region
      %s381 = ssub.s32 128, 128
      %382 = vsyncadd [#allocation4], %s381
      %s384 = sshll.u32 [#allocation8], 4
      %s385 = int_to_ptr.vmem [resolvable:$true] %s384
      %387 = dma.vmem_to_hbm [thread:$0]  %s385, 128, %s3, [#allocation4]
    $region29: #{tpu_custom_call.1} parent=1 // pred_fallthru
      _
    // Predicated region
    $region30: #{tpu_custom_call.1} parent=1 // pred_check
      _
    $region31: #{tpu_custom_call.1} parent=1 // pred_check_branch
      %389 = sbr.rel (0) target = $region33
    $region32: #{tpu_custom_call.1} parent=1 // pred_region
      %390 = dma.done [#allocation4], 128
    $region33: #{tpu_custom_call.1} parent=1 // pred_fallthru
      _
    %391 = vsyncpa [#allocation3], 1
    %392 = vsyncpa [#allocation6], 1
    %393 = vsyncpa [#allocation4], 1

</llo_original>
